<compile_context>
chip_gen: v5e
topology: v5e:2x2
jax: 0.10.0
libtpu: 0.0.40
codegen_flags: <defaults>
</compile_context>

<pallas_src>
import functools

import jax
import jax.numpy as jnp
from jax import lax
from jax.experimental import pallas as pl
from jax.experimental.pallas import tpu as pltpu

LANE = 128
SUBLANE = 8
PREFERRED_TILE_ROWS = 8192  # (8192, 128) f32 tile = 4 MiB per input per step


def _round_up(x, m):
    return ((x + m - 1) // m) * m


def _tpu_params():
    """Best-effort trace-time hardware query: (VMEM capacity, TensorCores)."""
    vmem_cap = 64 << 20      # conservative default = v7x per-TC VMEM
    n_cores = 1              # conservative default = single-TC v5e/v6e
    try:
        info = pltpu.get_tpu_info()
    except Exception:
        info = None
    if info is not None:
        cap = getattr(info, "vmem_capacity_bytes", None)
        if cap:
            try:
                vmem_cap = int(cap)
            except Exception:
                pass
        for name in ("num_tensorcores", "tensorcore_count", "num_cores",
                     "core_count"):
            val = getattr(info, name, None)
            if val:
                try:
                    n_cores = max(1, int(val))
                    break
                except Exception:
                    pass
    return vmem_cap, n_cores


def _pow(x, gamma):
    """pow(x, gamma) without the EUP exp/log pair when gamma is an integer."""
    g = float(gamma)
    if g == 2.0:
        return x * x
    if g == int(g) and 0.0 <= g <= 16.0:
        return lax.integer_pow(x, int(g))
    return jnp.power(x, g)


def _focal_terms_general(p, t, w_neg, w_pos, gamma):
    """Elementwise focal terms; mirrors the PyTorch forward (soft targets OK)."""
    inv_t = 1.0 - t
    p_white = p * t + inv_t
    p_black = p * inv_t
    positive = -w_pos * _pow(1.0 - p_white, gamma) * jnp.log(p_white)
    negative = -w_neg * _pow(p_black, gamma) * jnp.log(1.0 - p_black)
    return positive + negative


def _focal_sum_kernel(p_ref, t_ref, out_ref, *, w_neg, w_pos, gamma,
                      binary_target, tile_rows, tiles_per_split,
                      rows_main, mask_rows, first_mask_tile):
    c = pl.program_id(0)   # TensorCore split (parallel axis)
    i = pl.program_id(1)   # tile within the split (reduction axis)

    # Output block is resident across the reduction axis -> zero on first step.
    @pl.when(i == 0)
    def _():
        out_ref[...] = jnp.zeros_like(out_ref)

    def accumulate(apply_mask):
        p = p_ref[...]
        if p.dtype != jnp.float32:
            p = p.astype(jnp.float32)

        if binary_target:
            # Hard {0,1} targets: one log / one pow per element.
            t_pos = t_ref[...] != 0
            x = jnp.where(t_pos, p, 1.0 - p)
            w = jnp.where(t_pos, jnp.float32(w_pos), jnp.float32(w_neg))
            loss = -w * _pow(1.0 - x, gamma) * jnp.log(x)
        else:
            t = t_ref[...]
            if t.dtype != jnp.float32:
                t = t.astype(jnp.float32)
            loss = _focal_terms_general(p, t, w_neg, w_pos, gamma)

        if apply_mask:
            # Logical (unclamped) tile index; rows >= rows_main are edge /
            # duplicated padding rows whose (garbage) loss is discarded by
            # the select -- TPU vsel does not propagate NaN/Inf from the
            # unselected branch.
            row0 = (c * tiles_per_split + i) * tile_rows
            rows = row0 + lax.broadcasted_iota(jnp.int32, (tile_rows, LANE), 0)
            loss = jnp.where(rows < rows_main, loss, 0.0)

        # Fold the (tile_rows, 128) loss tile into the vreg-shaped (8, 128)
        # accumulator with pure VPU adds (no cross-lane movement).
        out_ref[...] += jnp.sum(
            loss.reshape(tile_rows // SUBLANE, SUBLANE, LANE), axis=0)

    if mask_rows:
        needs_mask = (c * tiles_per_split + i) >= first_mask_tile

        @pl.when(needs_mask)
        def _():
            accumulate(True)

        @pl.when(jnp.logical_not(needs_mask))
        def _():
            accumulate(False)
    else:
        accumulate(False)


def focal_loss(p, target, *, weight_negative=0.75, weight_positive=50.0,
               gamma=2.0, tile_rows=None, binary_target=None):
    """Pallas TPU implementation of FocalLoss.forward (returns a scalar).

    `target` may be bool/int8/bf16/f32 (cast to f32 happens in-kernel, saving
    HBM bytes); bool/int targets automatically take the single-log binary
    path.  `p` may be bf16 if the accuracy budget allows.
    """
    assert p.shape == target.shape
    n_elem = int(p.size)
    w_neg = float(weight_negative)
    w_pos = float(weight_positive)

    if binary_target is None:
        binary_target = bool(
            target.dtype == jnp.bool_
            or jnp.issubdtype(target.dtype, jnp.integer))

    # bool refs are awkward on-chip; int8 is equivalent and just as small.
    if target.dtype == jnp.bool_:
        target = target.astype(jnp.int8)

    p_flat = jnp.reshape(p, (-1,))
    t_flat = jnp.reshape(target, (-1,))

    # Degenerate tiny input: plain JAX is cheaper than launching a kernel.
    if n_elem < SUBLANE * LANE:
        return jnp.mean(_focal_terms_general(
            p_flat.astype(jnp.float32), t_flat.astype(jnp.float32),
            w_neg, w_pos, gamma))

    # Bulk handled by the kernel: largest multiple of LANE (128) elements.
    # The in-kernel row mask + Pallas edge-block padding cover the partial
    # last (8,128) block, so only a <128-element tail falls back to JAX.
    # Note: for producers whose size is not a multiple of 128 this slice
    # materializes a copy of the bulk; pad at the source to avoid it.
    n_main = (n_elem // LANE) * LANE
    rows_main = n_main // LANE

    vmem_cap, n_cores = _tpu_params()
    vmem_limit = (64 << 20) if vmem_cap >= (100 << 20) else (48 << 20)

    # Sublane packing: bf16 blocks need 16-row multiples, int8/bool 32-row.
    min_itemsize = min(jnp.dtype(p.dtype).itemsize,
                       jnp.dtype(target.dtype).itemsize)
    row_mult = SUBLANE * max(1, 4 // max(1, int(min_itemsize)))

    if tile_rows is None:
        tile_rows = min(PREFERRED_TILE_ROWS, _round_up(rows_main, row_mult))
    tile_rows = _round_up(max(int(tile_rows), row_mult), row_mult)

    num_tiles = -(-rows_main // tile_rows)
    # Shard across TensorCores only where there are two cores to feed (v7x).
    splits = 2 if (n_cores >= 2 and num_tiles >= 2) else 1
    tiles_per_split = -(-num_tiles // splits)
    covered_rows = splits * tiles_per_split * tile_rows
    has_dup_tiles = splits * tiles_per_split != num_tiles
    mask_rows = covered_rows != rows_main
    first_mask_tile = (num_tiles - 1) if (rows_main % tile_rows) else num_tiles

    p2d = p_flat[:n_main].reshape(rows_main, LANE)
    t2d = t_flat[:n_main].reshape(rows_main, LANE)

    def in_map(c, i):
        tile = c * tiles_per_split + i
        if has_dup_tiles:
            # Duplicated trailing tiles are clamped for the DMA and fully
            # masked inside the kernel, so they contribute exactly 0.
            tile = jnp.minimum(tile, num_tiles - 1)
        return (tile, 0)

    kernel = functools.partial(
        _focal_sum_kernel, w_neg=w_neg, w_pos=w_pos, gamma=gamma,
        binary_target=binary_target, tile_rows=tile_rows,
        tiles_per_split=tiles_per_split, rows_main=rows_main,
        mask_rows=mask_rows, first_mask_tile=first_mask_tile)

    partial_sums = pl.pallas_call(
        kernel,
        out_shape=jax.ShapeDtypeStruct((splits, SUBLANE, LANE), jnp.float32),
        grid_spec=pltpu.PrefetchScalarGridSpec(
            num_scalar_prefetch=0,
            grid=(splits, tiles_per_split),
            in_specs=[
                pl.BlockSpec((tile_rows, LANE), in_map),
                pl.BlockSpec((tile_rows, LANE), in_map),
            ],
            out_specs=pl.BlockSpec((None, SUBLANE, LANE),
                                   lambda c, i: (c, 0, 0)),
        ),
        compiler_params=pltpu.CompilerParams(
            dimension_semantics=("parallel", "arbitrary"),
            vmem_limit_bytes=int(vmem_limit),
        ),
    )(p2d, t2d)

    total = jnp.sum(partial_sums)

    # < 128-element tail: plain JAX.
    if n_main != n_elem:
        p_rem = p_flat[n_main:].astype(jnp.float32)
        t_rem = t_flat[n_main:].astype(jnp.float32)
        total = total + jnp.sum(
            _focal_terms_general(p_rem, t_rem, w_neg, w_pos, gamma))

    return total / jnp.float32(n_elem)


def _focal_loss_ref(p, target, w_neg=0.75, w_pos=50.0, gamma=2.0):
    """Pure-JAX reference mirroring the PyTorch module (torch.pow path)."""
    p = p.astype(jnp.float32)
    t = target.astype(jnp.float32)
    inv_t = t * -1.0 + 1.0
    p_white = p * t + inv_t
    p_black = p * inv_t
    positive = -w_pos * jnp.power(1.0 - p_white, gamma) * jnp.log(p_white)
    negative = -w_neg * jnp.power(p_black, gamma) * jnp.log(1.0 - p_black)
    return jnp.mean(positive + negative)


if __name__ == "__main__":
    key = jax.random.PRNGKey(0)
    k1, k2, k3, k4, k5, k6 = jax.random.split(key, 6)

    # 1) Primary check: NCHW input consistent with the module; p in (0, 1),
    #    binary target stored as float (general two-log path, no masking).
    shape = (2, 4, 16, 16)
    p = jax.random.uniform(k1, shape, jnp.float32,
                           minval=1e-3, maxval=1.0 - 1e-3)
    target = (jax.random.uniform(k2, shape, jnp.float32) > 0.5).astype(
        jnp.float32)
    loss = focal_loss(p, target)
    jax.block_until_ready(loss)
    ref = _focal_loss_ref(p, target)
    assert jnp.allclose(loss, ref, rtol=1e-4, atol=1e-4), (loss, ref)

    # 2) Exercises the <128-element remainder, the partial edge block, the
    #    confined in-kernel row mask and tile clamping (small tile_rows only
    #    to hit those paths at a small test size).
    shape2 = (2, 4, 30, 30)
    p2 = jax.random.uniform(k3, shape2, jnp.float32,
                            minval=1e-3, maxval=1.0 - 1e-3)
    t2 = (jax.random.uniform(k4, shape2, jnp.float32) > 0.5).astype(
        jnp.float32)
    loss2 = focal_loss(p2, t2, tile_rows=32)
    jax.block_until_ready(loss2)
    ref2 = _focal_loss_ref(p2, t2)
    assert jnp.allclose(loss2, ref2, rtol=1e-4, atol=1e-4), (loss2, ref2)

    # 3) Exercises the hard-binary single-log path with an int8 target
    #    (sublane-packed sub-32-bit input, no masking).
    shape3 = (2, 8, 16, 16)
    p3 = jax.random.uniform(k5, shape3, jnp.float32,
                            minval=1e-3, maxval=1.0 - 1e-3)
    t3 = (jax.random.uniform(k6, shape3, jnp.float32) > 0.5).astype(jnp.int8)
    loss3 = focal_loss(p3, t3)
    jax.block_until_ready(loss3)
    ref3 = _focal_loss_ref(p3, t3)
    assert jnp.allclose(loss3, ref3, rtol=1e-4, atol=1e-4), (loss3, ref3)

    print("KERNEL_OK")
</pallas_src>

<mosaic_0001>
module attributes {stable_mosaic.version = 11 : i64} {
  func.func @_focal_sum_kernel(%arg0: i32, %arg1: i32, %arg2: memref<16x128xf32, #tpu.memory_space<vmem>>, %arg3: memref<16x128xf32, #tpu.memory_space<vmem>>, %arg4: memref<1x8x128xf32, #tpu.memory_space<vmem>>) attributes {dimension_semantics = [#tpu.dimension_semantics<parallel>, #tpu.dimension_semantics<arbitrary>], iteration_bounds = array<i64: 1, 1>, scalar_prefetch = 0 : i64, scratch_operands = 0 : i64, tpu.core_type = #tpu.core_type<tc>, window_params = [{transform_indices = @transform_0, window_bounds = array<i64: 16, 128>}, {transform_indices = @transform_1, window_bounds = array<i64: 16, 128>}, {transform_indices = @transform_2, window_bounds = array<i64: 1, 8, 128>}]} {
    %c0_i32 = arith.constant 0 : i32
    %0 = arith.cmpi eq, %arg1, %c0_i32 : i32
    %1 = arith.extui %0 : i1 to i32
    %c0_i32_0 = arith.constant 0 : i32
    %2 = arith.cmpi ne, %1, %c0_i32_0 : i32
    scf.if %2 {
      %cst_15 = arith.constant 0.000000e+00 : f32
      %33 = vector.broadcast %cst_15 : f32 to vector<8x128xf32>
      %c0_16 = arith.constant 0 : index
      %c0_17 = arith.constant 0 : index
      %c0_18 = arith.constant 0 : index
      %34 = vector.load %arg4[%c0_16, %c0_17, %c0_18] : memref<1x8x128xf32, #tpu.memory_space<vmem>>, vector<1x8x128xf32>
      %35 = vector.shape_cast %34 : vector<1x8x128xf32> to vector<8x128xf32>
      %36 = vector.shape_cast %33 : vector<8x128xf32> to vector<1x8x128xf32>
      tpu.vector_store %arg4[%c0_16, %c0_17, %c0_18], %36 {strides = array<i32>} : memref<1x8x128xf32, #tpu.memory_space<vmem>>, vector<1x8x128xf32>,
    } else {
    }
    %c0 = arith.constant 0 : index
    %c0_1 = arith.constant 0 : index
    %3 = vector.load %arg2[%c0, %c0_1] : memref<16x128xf32, #tpu.memory_space<vmem>>, vector<16x128xf32>
    %c0_2 = arith.constant 0 : index
    %c0_3 = arith.constant 0 : index
    %4 = vector.load %arg3[%c0_2, %c0_3] : memref<16x128xf32, #tpu.memory_space<vmem>>, vector<16x128xf32>
    %cst = arith.constant 1.000000e+00 : f32
    %5 = vector.broadcast %cst : f32 to vector<16x128xf32>
    %6 = arith.subf %5, %4 : vector<16x128xf32>
    %7 = arith.mulf %3, %4 : vector<16x128xf32>
    %8 = arith.addf %7, %6 : vector<16x128xf32>
    %9 = arith.mulf %3, %6 : vector<16x128xf32>
    %cst_4 = arith.constant 1.000000e+00 : f32
    %10 = vector.broadcast %cst_4 : f32 to vector<16x128xf32>
    %11 = arith.subf %10, %8 : vector<16x128xf32>
    %12 = arith.mulf %11, %11 : vector<16x128xf32>
    %cst_5 = arith.constant -5.000000e+01 : f32
    %13 = vector.broadcast %cst_5 : f32 to vector<16x128xf32>
    %14 = arith.mulf %13, %12 : vector<16x128xf32>
    %15 = math.log %8 : vector<16x128xf32>
    %16 = arith.mulf %14, %15 : vector<16x128xf32>
    %17 = arith.mulf %9, %9 : vector<16x128xf32>
    %cst_6 = arith.constant -7.500000e-01 : f32
    %18 = vector.broadcast %cst_6 : f32 to vector<16x128xf32>
    %19 = arith.mulf %18, %17 : vector<16x128xf32>
    %cst_7 = arith.constant 1.000000e+00 : f32
    %20 = vector.broadcast %cst_7 : f32 to vector<16x128xf32>
    %21 = arith.subf %20, %9 : vector<16x128xf32>
    %22 = math.log %21 : vector<16x128xf32>
    %23 = arith.mulf %19, %22 : vector<16x128xf32>
    %24 = arith.addf %16, %23 : vector<16x128xf32>
    %c0_8 = arith.constant 0 : index
    %c0_9 = arith.constant 0 : index
    %c0_10 = arith.constant 0 : index
    %25 = vector.load %arg4[%c0_8, %c0_9, %c0_10] : memref<1x8x128xf32, #tpu.memory_space<vmem>>, vector<1x8x128xf32>
    %26 = vector.shape_cast %25 : vector<1x8x128xf32> to vector<8x128xf32>
    %27 = vector.shape_cast %24 : vector<16x128xf32> to vector<2x8x128xf32>
    %cst_11 = arith.constant dense<0.000000e+00> : vector<8x128xf32>
    %28 = vector.multi_reduction <add>, %27, %cst_11 [0] : vector<2x8x128xf32> to vector<8x128xf32>
    %29 = arith.addf %26, %28 : vector<8x128xf32>
    %c0_12 = arith.constant 0 : index
    %c0_13 = arith.constant 0 : index
    %c0_14 = arith.constant 0 : index
    %30 = vector.load %arg4[%c0_12, %c0_13, %c0_14] : memref<1x8x128xf32, #tpu.memory_space<vmem>>, vector<1x8x128xf32>
    %31 = vector.shape_cast %30 : vector<1x8x128xf32> to vector<8x128xf32>
    %32 = vector.shape_cast %29 : vector<8x128xf32> to vector<1x8x128xf32>
    tpu.vector_store %arg4[%c0_12, %c0_13, %c0_14], %32 {strides = array<i32>} : memref<1x8x128xf32, #tpu.memory_space<vmem>>, vector<1x8x128xf32>,
    return
  }
  func.func @transform_0(%arg0: i32, %arg1: i32) -> (i32, i32) {
    %c1_i32 = arith.constant 1 : i32
    %0 = arith.muli %arg0, %c1_i32 : i32
    %1 = arith.addi %0, %arg1 : i32
    %c0_i32 = arith.constant 0 : i32
    %c0_i32_0 = arith.constant 0 : i32
    return %1, %c0_i32 : i32, i32
  }
  func.func @transform_1(%arg0: i32, %arg1: i32) -> (i32, i32) {
    %c1_i32 = arith.constant 1 : i32
    %0 = arith.muli %arg0, %c1_i32 : i32
    %1 = arith.addi %0, %arg1 : i32
    %c0_i32 = arith.constant 0 : i32
    %c0_i32_0 = arith.constant 0 : i32
    return %1, %c0_i32 : i32, i32
  }
  func.func @transform_2(%arg0: i32, %arg1: i32) -> (i32, i32, i32) {
    %c0_i32 = arith.constant 0 : i32
    %c0_i32_0 = arith.constant 0 : i32
    %c0_i32_1 = arith.constant 0 : i32
    return %arg0, %c0_i32, %c0_i32_0 : i32, i32, i32
  }
}

</mosaic_0001>

<llo_original>
// kernel: tpu_custom_call.1
$region0: #{tpu_custom_call.1}
  #allocation0 [shape = 'u32[]', space=smem, size = 0x4, offset = 0x4, fixed_abs, tag = 'smem constant byte address 0x4 - core index']
  #allocation1 [shape = 'u32[72,128]{1,0:T(1,128)}', space=vmem, size = 0x9000, scoped, tag = 'internal scratch']
  %s0 = inlined_call_operand.hbm [shape: f32[16,128], index: 0, kind: input, shape index: {}]
  %s1 = inlined_call_operand.hbm [shape: f32[16,128], index: 1, kind: input, shape index: {}]
  %s2 = inlined_call_operand.hbm [shape: f32[1,8,128], index: 2, kind: output, shape index: {}]
  %s3 = sld [smem:[#allocation0]]
  $region30: #{tpu_custom_call.1} parent=0
    _
  %s5 = ssub.s32 1, %s3
  %s6 = scalar_select 0, %s5, %s3
  $region1: #{tpu_custom_call.1} parent=0
    #allocation2 [shape = 'u8[8192]{0}', space=vmem, size = 0x2000, scoped, tag = 'input window, operand 0, single buffered']
    #allocation3 [shape = 's32[1]{0}', space=sflag, size = 0x4, scoped, tag = 'scoped memory for tpu_custom_call.1']
    #allocation4 [shape = 's32[1]{0}', space=sflag, size = 0x4, scoped, tag = 'scoped memory for tpu_custom_call.1']
    #allocation5 [shape = 'u8[8192]{0}', space=vmem, size = 0x2000, scoped, tag = 'input window, operand 1, single buffered']
    #allocation6 [shape = 's32[1]{0}', space=sflag, size = 0x4, scoped, tag = 'scoped memory for tpu_custom_call.1']
    #allocation7 [shape = 'u8[4096]{0}', space=vmem, size = 0x1000, scoped, tag = 'output window, operand 0, single buffered']
    %7 = vsyncpa [#allocation3], 0
    %8 = vsyncpa [#allocation6], 0
    %9 = vsyncpa [#allocation4], 0
    // Predicated region
    $region2: #{tpu_custom_call.1} parent=1 // pred_check
      _
    $region3: #{tpu_custom_call.1} parent=1 // pred_check_branch
      %11 = sbr.rel (0) target = $region5
    $region4: #{tpu_custom_call.1} parent=1 // pred_region
      %s12 = sadd.s32 0, 0
      %s13 = smul.u32 2, %s12
      %15 = vsyncadd [#allocation3], 0
      %s16 = smul.addr %s13, 8
      %s17 = scalar_lea.hbm %s0, %s16
      %s18 = sshll.u32 %s17, 4
      %s19 = int_to_ptr.hbm [resolvable:$true] %s18
      %s20 = sshll.u32 [#allocation2], 4
      %s21 = int_to_ptr.vmem [resolvable:$true] %s20
      %26 = dma.hbm_to_vmem [thread:$0]  %s19, 256, %s21, [#allocation3], 128, 128, 8
    $region5: #{tpu_custom_call.1} parent=1 // pred_fallthru
      _
    // Predicated region
    $region6: #{tpu_custom_call.1} parent=1 // pred_check
      _
    $region7: #{tpu_custom_call.1} parent=1 // pred_check_branch
      %28 = sbr.rel (0) target = $region9
    $region8: #{tpu_custom_call.1} parent=1 // pred_region
      %s29 = sadd.s32 0, 0
      %s30 = smul.u32 2, %s29
      %32 = vsyncadd [#allocation6], 0
      %s33 = smul.addr %s30, 8
      %s34 = scalar_lea.hbm %s1, %s33
      %s35 = sshll.u32 %s34, 4
      %s36 = int_to_ptr.hbm [resolvable:$true] %s35
      %s37 = sshll.u32 [#allocation5], 4
      %s38 = int_to_ptr.vmem [resolvable:$true] %s37
      %43 = dma.hbm_to_vmem [thread:$0]  %s36, 256, %s38, [#allocation6], 128, 128, 8
    $region9: #{tpu_custom_call.1} parent=1 // pred_fallthru
      _
    // Predicated region
    $region10: #{tpu_custom_call.1} parent=1 // pred_check
      _
    $region11: #{tpu_custom_call.1} parent=1 // pred_check_branch
      %45 = sbr.rel (0) target = $region13
    $region12: #{tpu_custom_call.1} parent=1 // pred_region
      %47 = dma.done [#allocation3], 256
    $region13: #{tpu_custom_call.1} parent=1 // pred_fallthru
      _
    // Predicated region
    $region14: #{tpu_custom_call.1} parent=1 // pred_check
      _
    $region15: #{tpu_custom_call.1} parent=1 // pred_check_branch
      %49 = sbr.rel (0) target = $region17
    $region16: #{tpu_custom_call.1} parent=1 // pred_region
      %51 = dma.done [#allocation6], 256
    $region17: #{tpu_custom_call.1} parent=1 // pred_fallthru
      _
    %s52 = sadd.s32 0, 0
    %s53 = smul.u32 2, %s52
    %s54 = sadd.s32 0, 0
    %s55 = smul.u32 2, %s54
    %p56 = scmp.eq.s32.totalorder 0, 0
    // Predicated region
    $region18: #{tpu_custom_call.1} parent=1 // pred_check
      %p57 = pneg %p56
    $region19: #{tpu_custom_call.1} parent=1 // pred_check_branch
      %59 = sbr.rel (%p57) target = $region21
    $region20: #{tpu_custom_call.1} parent=1 // pred_region
      %60 = vst [vmem:[#allocation7] sm:$0xff] 0.0
    $region21: #{tpu_custom_call.1} parent=1 // pred_fallthru
      _
    %v61 = vld [vmem:[#allocation2] sm:$0xff]
    %v62 = vld [vmem:[#allocation2 + $0x8] sm:$0xff]
    %v63 = vld [vmem:[#allocation5] sm:$0xff]
    %v64 = vld [vmem:[#allocation5 + $0x8] sm:$0xff]
    %v65 = vsub.f32 1.0, %v63
    %v66 = vsub.f32 1.0, %v64
    %v67 = vmul.f32 %v61, %v63
    %v68 = vmul.f32 %v62, %v64
    %v69 = vadd.f32 %v67, %v65
    %v70 = vadd.f32 %v68, %v66
    %v71 = vmul.f32 %v61, %v65
    %v72 = vmul.f32 %v62, %v66
    %v73 = vsub.f32 1.0, %v69
    %v74 = vsub.f32 1.0, %v70
    %v75 = vmul.f32 %v73, %v73
    %v76 = vmul.f32 %v74, %v74
    %v77 = vmul.f32 %v75, -50.0
    %v78 = vmul.f32 %v76, -50.0
    %v79 = vlog2.pop %v69
    %v80 = vmul.f32 %v79, 0.6931472
    %v81 = vlog2.pop %v70
    %v82 = vmul.f32 %v81, 0.6931472
    %v83 = vmul.f32 %v77, %v80
    %v84 = vmul.f32 %v78, %v82
    %v85 = vmul.f32 %v71, %v71
    %v86 = vmul.f32 %v72, %v72
    %v87 = vmul.f32 %v85, -0.75
    %v88 = vmul.f32 %v86, -0.75
    %v89 = vsub.f32 1.0, %v71
    %v90 = vsub.f32 1.0, %v72
    %v91 = vlog2.pop %v89
    %v92 = vmul.f32 %v91, 0.6931472
    %v93 = vlog2.pop %v90
    %v94 = vmul.f32 %v93, 0.6931472
    %v95 = vmul.f32 %v87, %v92
    %v96 = vmul.f32 %v88, %v94
    %v97 = vadd.f32 %v83, %v95
    %v98 = vadd.f32 %v84, %v96
    %v99 = vld [vmem:[#allocation7] sm:$0xff]
    %v100 = vadd.f32 %v97, %v98
    %v101 = vadd.f32 %v99, %v100
    %102 = vst [vmem:[#allocation7] sm:$0xff] %v101
    // Predicated region
    $region22: #{tpu_custom_call.1} parent=1 // pred_check
      _
    $region23: #{tpu_custom_call.1} parent=1 // pred_check_branch
      %104 = sbr.rel (0) target = $region25
    $region24: #{tpu_custom_call.1} parent=1 // pred_region
      %106 = vsyncadd [#allocation4], 0
      %s108 = sshll.u32 [#allocation7], 4
      %s109 = int_to_ptr.vmem [resolvable:$true] %s108
      %s110 = sshll.u32 %s2, 4
      %s111 = int_to_ptr.hbm [resolvable:$true] %s110
      %113 = dma.vmem_to_hbm [thread:$0]  %s109, 128, %s111, [#allocation4]
    $region25: #{tpu_custom_call.1} parent=1 // pred_fallthru
      _
    // Predicated region
    $region26: #{tpu_custom_call.1} parent=1 // pred_check
      _
    $region27: #{tpu_custom_call.1} parent=1 // pred_check_branch
      %115 = sbr.rel (0) target = $region29
    $region28: #{tpu_custom_call.1} parent=1 // pred_region
      %117 = dma.done [#allocation4], 128
    $region29: #{tpu_custom_call.1} parent=1 // pred_fallthru
      _
    %118 = vsyncpa [#allocation3], 1
    %119 = vsyncpa [#allocation6], 1
    %120 = vsyncpa [#allocation4], 1

</llo_original>
